<compile_context>
chip_gen: v6e
topology: v6e:2x2x1
jax: 0.10.0
libtpu: 0.0.40
codegen_flags: <defaults>
</compile_context>

<pallas_src>
import numpy as np
import jax
import jax.numpy as jnp
from jax.experimental import pallas as pl
from jax.experimental.pallas import tpu as pltpu


_VMEM_LIMIT_BYTES = 48 * 1024 * 1024   # < v7x 64 MiB physical; > 16/32 MiB defaults
_BLOCK_BUDGET_BYTES = 4 * 1024 * 1024  # per-step block budget for batch tiling


# ----------------------------- Pallas kernels ------------------------------ #

def _norm_linear_kernel(x_ref, w_ref, seq_ref, mean_ref, std_ref):
    """RevIN 'norm' + Linear(seq_len -> pred_len, no bias), channel-major tile.

    x_ref:   (Bt, C, L) f32   (time on lanes)
    w_ref:   (L, P)     bf16  (transposed Linear weight)
    seq_ref: (Bt, C, L+P) bf16  -> [xn | yhat] fused along time
    mean_ref/std_ref: (Bt, C, 1) f32
    """
    bt, c, l = x_ref.shape
    p = w_ref.shape[1]
    x = x_ref[...].astype(jnp.float32).reshape(bt * c, l)          # (Bt*C, L)

    # One-pass mean / (biased) variance: a single lane-reduction pass over time.
    s1 = jnp.sum(x, axis=-1, keepdims=True)
    s2 = jnp.sum(x * x, axis=-1, keepdims=True)
    mean = s1 * (1.0 / l)
    var = s2 * (1.0 / l) - mean * mean
    std = jnp.sqrt(var + 1e-5)
    xn = (x - mean) / std                                          # (Bt*C, L) f32

    # MXU: bf16 operands, f32 accumulation; output lane dim = P (lane-dense).
    yhat = jnp.dot(xn.astype(jnp.bfloat16), w_ref[...],
                   preferred_element_type=jnp.float32)             # (Bt*C, P)

    seq_ref[:, :, :l] = xn.reshape(bt, c, l).astype(seq_ref.dtype)
    seq_ref[:, :, l:] = yhat.reshape(bt, c, p).astype(seq_ref.dtype)
    mean_ref[...] = mean.reshape(bt, c, 1)
    std_ref[...] = std.reshape(bt, c, 1)


def _mix_denorm_kernel(seq_ref, g_ref, w_ref, mean_ref, std_ref, y_ref, ss_ref):
    """Leader mixing (precomputed softmax weights) + RevIN 'denorm'.

    seq_ref:  (Bt, C, L+P) bf16   (yhat is the last P lanes)
    g_ref:    (Bt, C, K, P) bf16  (interpolated leader streams)
    w_ref:    (C, 1+K) f32        (softmax(leader_weight), precomputed)
    mean/std: (Bt, C, 1) f32
    y_ref:    (Bt, C, P) f32
    ss_ref:   (Bt, 1+K, C, P) f32
    """
    bt, c, kk, p = g_ref.shape
    l = seq_ref.shape[2] - p

    yhat = seq_ref[:, :, l:].astype(jnp.float32)                   # (Bt, C, P)
    w = w_ref[...]                                                 # (C, 1+K)

    # Unrolled FMA accumulation over self + K leaders (no concat / XLU reduce).
    acc = w[None, :, 0, None] * yhat                               # (Bt, C, P)
    ss_ref[:, 0:1, :, :] = yhat[:, None, :, :].astype(ss_ref.dtype)
    for j in range(kk):                                            # K is small & static
        gj = g_ref[:, :, j, :].astype(jnp.float32)                 # (Bt, C, P)
        acc = acc + w[None, :, j + 1, None] * gj
        ss_ref[:, j + 1:j + 2, :, :] = gj[:, None, :, :].astype(ss_ref.dtype)

    y = acc * std_ref[...] + mean_ref[...]                         # RevIN denorm
    y_ref[...] = y.astype(y_ref.dtype)


# ----------------------------- pallas_call wrappers ------------------------ #

def _pick_batch_tile(batch, per_item_bytes, budget_bytes=_BLOCK_BUDGET_BYTES):
    """Largest divisor of `batch` whose block fits the budget while keeping the
    parallel grid extent >= 2 (so megacore chips can still shard the grid)."""
    best = 1
    for bt in range(1, batch + 1):
        if batch % bt != 0:
            continue
        if bt * per_item_bytes > budget_bytes:
            continue
        if batch == 1 or (batch // bt) >= 2:
            best = bt
    return best


def _norm_linear(x_cm, w_t, bt):
    B, C, L = x_cm.shape
    P = w_t.shape[1]
    grid = (B // bt,)
    return pl.pallas_call(
        _norm_linear_kernel,
        out_shape=(
            jax.ShapeDtypeStruct((B, C, L + P), jnp.bfloat16),   # seq = [xn | yhat]
            jax.ShapeDtypeStruct((B, C, 1), jnp.float32),        # mean
            jax.ShapeDtypeStruct((B, C, 1), jnp.float32),        # stdev
        ),
        grid=grid,
        in_specs=[
            pl.BlockSpec((bt, C, L), lambda b: (b, 0, 0)),
            pl.BlockSpec((L, P), lambda b: (0, 0)),
        ],
        out_specs=(
            pl.BlockSpec((bt, C, L + P), lambda b: (b, 0, 0)),
            pl.BlockSpec((bt, C, 1), lambda b: (b, 0, 0)),
            pl.BlockSpec((bt, C, 1), lambda b: (b, 0, 0)),
        ),
        compiler_params=pltpu.CompilerParams(
            dimension_semantics=("parallel",),
            vmem_limit_bytes=_VMEM_LIMIT_BYTES),
    )(x_cm, w_t)


def _mix_denorm(seq_cm, gathered, w_soft, mean, std, bt):
    B, C, T = seq_cm.shape
    K, P = gathered.shape[2], gathered.shape[3]
    grid = (B // bt,)
    return pl.pallas_call(
        _mix_denorm_kernel,
        out_shape=(
            jax.ShapeDtypeStruct((B, C, P), jnp.float32),        # y (channel-major)
            jax.ShapeDtypeStruct((B, 1 + K, C, P), jnp.float32), # seq_shifted (cm)
        ),
        grid=grid,
        in_specs=[
            pl.BlockSpec((bt, C, T), lambda b: (b, 0, 0)),
            pl.BlockSpec((bt, C, K, P), lambda b: (b, 0, 0, 0)),
            pl.BlockSpec((C, 1 + K), lambda b: (0, 0)),
            pl.BlockSpec((bt, C, 1), lambda b: (b, 0, 0)),
            pl.BlockSpec((bt, C, 1), lambda b: (b, 0, 0)),
        ],
        out_specs=(
            pl.BlockSpec((bt, C, P), lambda b: (b, 0, 0)),
            pl.BlockSpec((bt, 1 + K, C, P), lambda b: (b, 0, 0, 0)),
        ),
        compiler_params=pltpu.CompilerParams(
            dimension_semantics=("parallel",),
            vmem_limit_bytes=_VMEM_LIMIT_BYTES),
    )(seq_cm, gathered, w_soft, mean, std)


# ----------------------------- full forward pass --------------------------- #

def auto_lead_forward(x, params):
    """AutoLead forward (univariate=False). Returns (y_hat, seq_shifted)."""
    B, L, C = x.shape
    W = params["linear_weight"]                 # (P, L)
    P = W.shape[0]
    leaders = params["leaders"].astype(jnp.int32)   # (C*K,) flat channel indices
    shifts_p = params["shifts"]                 # (C*K,) raw shift parameters
    lw = params["leader_weight"]                # (C, 1+K)
    K = lw.shape[-1] - 1

    per_item_bytes = (C * L * 4                       # x block (f32)
                      + 2 * C * (L + P) * 2           # seq write + read (bf16)
                      + C * K * P * 2                 # gathered (bf16)
                      + C * P * 4                     # y
                      + (1 + K) * C * P * 4           # seq_shifted
                      + 8 * C)                        # mean/std
    bt = _pick_batch_tile(B, per_item_bytes)

    # Layout plumbing: present channel-major (time-on-lanes) slabs to the kernels.
    x_cm = jnp.transpose(x, (0, 2, 1))                           # (B, C, L)
    w_t = jnp.transpose(W).astype(jnp.bfloat16)                  # (L, P)

    # Hot path 1 (Pallas): RevIN norm + time projection; emits bf16 [xn | yhat].
    seq_cm, mean, std = _norm_linear(x_cm, w_t, bt)

    # Glue (JAX): leader selection + fractional time-shift interpolation.
    # Each (c, k) window is a *contiguous* P-length slice of the leader channel,
    # expressed here as a single fused gather on the bf16 channel-major seq.
    shifts = jax.nn.sigmoid(shifts_p) * L                        # (C*K,)
    sf = jnp.floor(shifts).astype(jnp.int32)
    sc = jnp.ceil(shifts).astype(jnp.int32)
    wf = (shifts - sf.astype(jnp.float32))[:, None]              # (C*K, 1)
    wc = (shifts + 1.0 - sc.astype(jnp.float32))[:, None]
    p_idx = jnp.arange(P, dtype=jnp.int32)[None, :]              # (1, P)
    t_f = (L - sf)[:, None] + p_idx                              # (C*K, P)
    t_c = (L - sc)[:, None] + p_idx
    lead = leaders[:, None]                                      # (C*K, 1)
    g_f = seq_cm[:, lead, t_f].astype(jnp.float32)               # (B, C*K, P)
    g_c = seq_cm[:, lead, t_c].astype(jnp.float32)
    gathered = (g_f * wf + g_c * wc).astype(jnp.bfloat16)        # (B, C*K, P)
    gathered = gathered.reshape(B, C, K, P)

    # Parameter-only softmax (C, 1+K): compute once here instead of per grid step.
    w_soft = jax.nn.softmax(lw.astype(jnp.float32), axis=-1)     # (C, 1+K)

    # Hot path 2 (Pallas): leader mixing (unrolled FMA) + RevIN denorm.
    y_cm, ss_cm = _mix_denorm(seq_cm, gathered, w_soft, mean, std, bt)

    # Final layout plumbing back to the module's (B, P, C[, 1+K]) convention.
    y = jnp.transpose(y_cm, (0, 2, 1))                           # (B, P, C)
    seq_shifted = jnp.transpose(ss_cm, (0, 3, 2, 1))             # (B, P, C, 1+K)
    return y, seq_shifted


def auto_lead_reference(x, params):
    """Pure-JAX f32 reference mirroring the PyTorch forward."""
    B, L, C = x.shape
    W = params["linear_weight"]
    P = W.shape[0]
    leaders = params["leaders"]
    shifts_p = params["shifts"]
    lw = params["leader_weight"]
    K = lw.shape[-1] - 1
    mean = jnp.mean(x, axis=1, keepdims=True)
    std = jnp.sqrt(jnp.var(x, axis=1, keepdims=True) + 1e-5)
    xn = (x - mean) / std
    yhat = jnp.einsum("blc,pl->bpc", xn, W)
    shifts = jax.nn.sigmoid(shifts_p) * L
    sf = jnp.floor(shifts).astype(jnp.int32)
    sc = jnp.ceil(shifts).astype(jnp.int32)
    seq = jnp.concatenate([xn, yhat], axis=1)[:, :, leaders]
    t_idx = jnp.arange(L, L + P, dtype=jnp.int32)[None, :, None]
    idx_f = jnp.broadcast_to(t_idx - sf[None, None, :], (B, P, C * K))
    idx_c = jnp.broadcast_to(t_idx - sc[None, None, :], (B, P, C * K))
    g = (jnp.take_along_axis(seq, idx_f, axis=1) * (shifts - sf)
         + jnp.take_along_axis(seq, idx_c, axis=1) * (shifts + 1.0 - sc))
    g = g.reshape(B, P, C, K)
    ss = jnp.concatenate([yhat[..., None], g], axis=-1)
    w = jax.nn.softmax(lw, axis=-1)
    y = jnp.sum(ss * w[None, None], axis=-1)
    y = y * std + mean
    return y, ss


if __name__ == "__main__":
    # Small config: batch=2, seq_len=16, pred_len=8, channels=4, K(leaders)=2.
    B, L, P, C, K = 2, 16, 8, 4, 2
    key = jax.random.PRNGKey(0)
    k1, k2, k3, k4 = jax.random.split(key, 4)

    x = jax.random.normal(k1, (B, L, C), dtype=jnp.float32)
    linear_weight = (jax.random.normal(k2, (P, L), dtype=jnp.float32)
                     / jnp.sqrt(jnp.float32(L)))                       # nn.Linear(L, P).weight
    leader_weight = (jnp.ones((C, 1 + K), dtype=jnp.float32) / (1 + K)
                     + 0.1 * jax.random.normal(k3, (C, 1 + K), dtype=jnp.float32))
    shifts = jax.random.normal(k4, (C * K,), dtype=jnp.float32)        # model.shifts
    # model.predefine_leaders: for channel c, its K leaders are (c+1)%C..(c+K)%C
    leaders = ((jnp.arange(C)[:, None] + jnp.arange(1, K + 1)[None, :]) % C)
    leaders = leaders.reshape(-1).astype(jnp.int32)

    params = dict(linear_weight=linear_weight, leader_weight=leader_weight,
                  shifts=shifts, leaders=leaders)

    y, seq_shifted = jax.block_until_ready(auto_lead_forward(x, params))
    y_ref, ss_ref = auto_lead_reference(x, params)

    # bf16 MXU operands + bf16 seq/gathered intermediates; worst-case rounding
    # error stays well under this tolerance.
    np.testing.assert_allclose(np.asarray(y), np.asarray(y_ref), rtol=2e-2, atol=2e-2)
    np.testing.assert_allclose(np.asarray(seq_shifted), np.asarray(ss_ref),
                               rtol=2e-2, atol=2e-2)
    print("KERNEL_OK")
</pallas_src>

<mosaic_0001>
module attributes {stable_mosaic.version = 11 : i64} {
  func.func @_norm_linear_kernel(%arg0: i32, %arg1: memref<1x4x16xf32, #tpu.memory_space<vmem>>, %arg2: memref<16x8xbf16, #tpu.memory_space<vmem>>, %arg3: memref<1x4x24xbf16, #tpu.memory_space<vmem>>, %arg4: memref<1x4x1xf32, #tpu.memory_space<vmem>>, %arg5: memref<1x4x1xf32, #tpu.memory_space<vmem>>) attributes {dimension_semantics = [#tpu.dimension_semantics<parallel>], iteration_bounds = array<i64: 2>, scalar_prefetch = 0 : i64, scratch_operands = 0 : i64, tpu.core_type = #tpu.core_type<tc>, window_params = [{transform_indices = @transform_0, window_bounds = array<i64: 1, 4, 16>}, {pipeline_mode = #tpu.pipeline_mode<synchronous>, transform_indices = @transform_1, window_bounds = array<i64: 16, 8>}, {transform_indices = @transform_2, window_bounds = array<i64: 1, 4, 24>}, {transform_indices = @transform_3, window_bounds = array<i64: 1, 4, 1>}, {transform_indices = @transform_4, window_bounds = array<i64: 1, 4, 1>}]} {
    %c0 = arith.constant 0 : index
    %c0_0 = arith.constant 0 : index
    %c0_1 = arith.constant 0 : index
    %0 = vector.load %arg1[%c0, %c0_0, %c0_1] : memref<1x4x16xf32, #tpu.memory_space<vmem>>, vector<1x4x16xf32>
    %1 = vector.shape_cast %0 : vector<1x4x16xf32> to vector<4x16xf32>
    %cst = arith.constant dense<0.000000e+00> : vector<4xf32>
    %2 = vector.multi_reduction <add>, %1, %cst [1] : vector<4x16xf32> to vector<4xf32>
    %3 = vector.shape_cast %2 : vector<4xf32> to vector<4x1xf32>
    %4 = arith.mulf %1, %1 : vector<4x16xf32>
    %cst_2 = arith.constant dense<0.000000e+00> : vector<4xf32>
    %5 = vector.multi_reduction <add>, %4, %cst_2 [1] : vector<4x16xf32> to vector<4xf32>
    %6 = vector.shape_cast %5 : vector<4xf32> to vector<4x1xf32>
    %cst_3 = arith.constant 6.250000e-02 : f32
    %7 = vector.broadcast %cst_3 : f32 to vector<4x1xf32>
    %8 = arith.mulf %3, %7 : vector<4x1xf32>
    %cst_4 = arith.constant 6.250000e-02 : f32
    %9 = vector.broadcast %cst_4 : f32 to vector<4x1xf32>
    %10 = arith.mulf %6, %9 : vector<4x1xf32>
    %11 = arith.mulf %8, %8 : vector<4x1xf32>
    %12 = arith.subf %10, %11 : vector<4x1xf32>
    %cst_5 = arith.constant 9.99999974E-6 : f32
    %13 = vector.broadcast %cst_5 : f32 to vector<4x1xf32>
    %14 = arith.addf %12, %13 : vector<4x1xf32>
    %15 = math.sqrt %14 : vector<4x1xf32>
    %16 = vector.broadcast %8 : vector<4x1xf32> to vector<4x16xf32>
    %17 = arith.subf %1, %16 : vector<4x16xf32>
    %18 = vector.broadcast %15 : vector<4x1xf32> to vector<4x16xf32>
    %19 = arith.divf %17, %18 : vector<4x16xf32>
    %20 = arith.truncf %19 : vector<4x16xf32> to vector<4x16xbf16>
    %c0_6 = arith.constant 0 : index
    %c0_7 = arith.constant 0 : index
    %21 = vector.load %arg2[%c0_6, %c0_7] : memref<16x8xbf16, #tpu.memory_space<vmem>>, vector<16x8xbf16>
    %cst_8 = arith.constant dense<0.000000e+00> : vector<4x8xf32>
    %22 = tpu.matmul %20, %21, %cst_8 {dimension_numbers = #tpu.dot_dimension_numbers<[1], [0], [0], [1], [0, 0, 1, 1], [], []>} : vector<4x16xbf16>, vector<16x8xbf16>, vector<4x8xf32> -> vector<4x8xf32>
    %23 = vector.shape_cast %19 : vector<4x16xf32> to vector<1x4x16xf32>
    %24 = arith.truncf %23 : vector<1x4x16xf32> to vector<1x4x16xbf16>
    %c0_9 = arith.constant 0 : index
    %c0_10 = arith.constant 0 : index
    %c0_11 = arith.constant 0 : index
    %25 = vector.load %arg3[%c0_9, %c0_10, %c0_11] : memref<1x4x24xbf16, #tpu.memory_space<vmem>>, vector<1x4x16xbf16>
    tpu.vector_store %arg3[%c0_9, %c0_10, %c0_11], %24 {strides = array<i32>} : memref<1x4x24xbf16, #tpu.memory_space<vmem>>, vector<1x4x16xbf16>,
    %26 = vector.shape_cast %22 : vector<4x8xf32> to vector<1x4x8xf32>
    %27 = arith.truncf %26 : vector<1x4x8xf32> to vector<1x4x8xbf16>
    %c0_12 = arith.constant 0 : index
    %c0_13 = arith.constant 0 : index
    %c16 = arith.constant 16 : index
    %28 = vector.load %arg3[%c0_12, %c0_13, %c16] : memref<1x4x24xbf16, #tpu.memory_space<vmem>>, vector<1x4x8xbf16>
    tpu.vector_store %arg3[%c0_12, %c0_13, %c16], %27 {strides = array<i32>} : memref<1x4x24xbf16, #tpu.memory_space<vmem>>, vector<1x4x8xbf16>,
    %29 = vector.shape_cast %8 : vector<4x1xf32> to vector<1x4x1xf32>
    %c0_14 = arith.constant 0 : index
    %c0_15 = arith.constant 0 : index
    %c0_16 = arith.constant 0 : index
    %30 = vector.load %arg4[%c0_14, %c0_15, %c0_16] : memref<1x4x1xf32, #tpu.memory_space<vmem>>, vector<1x4x1xf32>
    tpu.vector_store %arg4[%c0_14, %c0_15, %c0_16], %29 {strides = array<i32>} : memref<1x4x1xf32, #tpu.memory_space<vmem>>, vector<1x4x1xf32>,
    %31 = vector.shape_cast %15 : vector<4x1xf32> to vector<1x4x1xf32>
    %c0_17 = arith.constant 0 : index
    %c0_18 = arith.constant 0 : index
    %c0_19 = arith.constant 0 : index
    %32 = vector.load %arg5[%c0_17, %c0_18, %c0_19] : memref<1x4x1xf32, #tpu.memory_space<vmem>>, vector<1x4x1xf32>
    tpu.vector_store %arg5[%c0_17, %c0_18, %c0_19], %31 {strides = array<i32>} : memref<1x4x1xf32, #tpu.memory_space<vmem>>, vector<1x4x1xf32>,
    return
  }
  func.func @transform_0(%arg0: i32) -> (i32, i32, i32) {
    %c0_i32 = arith.constant 0 : i32
    %c0_i32_0 = arith.constant 0 : i32
    %c0_i32_1 = arith.constant 0 : i32
    return %arg0, %c0_i32, %c0_i32_0 : i32, i32, i32
  }
  func.func @transform_1(%arg0: i32) -> (i32, i32) {
    %c0_i32 = arith.constant 0 : i32
    %c0_i32_0 = arith.constant 0 : i32
    %c0_i32_1 = arith.constant 0 : i32
    return %c0_i32, %c0_i32_0 : i32, i32
  }
  func.func @transform_2(%arg0: i32) -> (i32, i32, i32) {
    %c0_i32 = arith.constant 0 : i32
    %c0_i32_0 = arith.constant 0 : i32
    %c0_i32_1 = arith.constant 0 : i32
    return %arg0, %c0_i32, %c0_i32_0 : i32, i32, i32
  }
  func.func @transform_3(%arg0: i32) -> (i32, i32, i32) {
    %c0_i32 = arith.constant 0 : i32
    %c0_i32_0 = arith.constant 0 : i32
    %c0_i32_1 = arith.constant 0 : i32
    return %arg0, %c0_i32, %c0_i32_0 : i32, i32, i32
  }
  func.func @transform_4(%arg0: i32) -> (i32, i32, i32) {
    %c0_i32 = arith.constant 0 : i32
    %c0_i32_0 = arith.constant 0 : i32
    %c0_i32_1 = arith.constant 0 : i32
    return %arg0, %c0_i32, %c0_i32_0 : i32, i32, i32
  }
}

</mosaic_0001>

<llo_original>
// kernel: tpu_custom_call.1
$region0: #{tpu_custom_call.1}
  #allocation0 [shape = 'u32[]', space=smem, size = 0x4, offset = 0x4, fixed_abs, tag = 'smem constant byte address 0x4 - core index']
  #allocation1 [shape = 'u32[144,128]{1,0:T(1,128)}', space=vmem, size = 0x12000, scoped, tag = 'internal scratch']
  %s0 = inlined_call_operand.vmem [shape: f32[2,4,16], index: 0, kind: input, shape index: {}]
  %s1 = inlined_call_operand.vmem [shape: bf16[16,8], index: 1, kind: input, shape index: {}]
  %s2 = inlined_call_operand.hbm [shape: bf16[2,4,24], index: 2, kind: output, shape index: {0}]
  %s3 = inlined_call_operand.vmem [shape: f32[2,4,1], index: 3, kind: output, shape index: {1}]
  %s4 = inlined_call_operand.vmem [shape: f32[2,4,1], index: 4, kind: output, shape index: {2}]
  %5 = xla_tuple %s2, %s3, %s4
  %s6 = sld [smem:[#allocation0]]
  $region57: #{tpu_custom_call.1} parent=0
    _
  %s8 = ssub.s32 1, %s6
  %s9 = scalar_select 0, %s8, %s6
  $region1: #{tpu_custom_call.1} parent=0
    #allocation2 [shape = 'u8[2048]{0}', space=vmem, size = 0x800, scoped, tag = 'output window, operand 0']
    #allocation3 [shape = 's32[2]{0}', space=sflag, size = 0x8, scoped, tag = 'scoped memory for tpu_custom_call.1']
    %10 = vsyncpa [#allocation3], 0
    %s11 = scalar_lea.sflag [#allocation3], 1
    %12 = vsyncpa %s11, 0
    loop: start=0, step=1, limit=4
    $region2: #{tpu_custom_call.1} parent=1 // loop_pre_header
      _
    $region3: #{tpu_custom_call.1} parent=1 // loop_header
      %s14 = sphi 0, %s18
      %p15 = scmp.ge.s32.totalorder %s14, 4
      %s24 = sphi 0, %s26
      %s27 = sphi 0, %s24
      %s28 = sphi 0, %s27
      %s44 = sphi 0, %s28
      %s48 = sphi 0, %s48
      %s50 = sphi 0, %s48
      %s51 = sphi 0, %s50
      %s65 = sphi 0, %s51
      %s71 = sphi 0, %s73
      %s74 = sphi 0, %s71
      %s75 = sphi 0, %s74
      %s91 = sphi 0, %s75
      %s97 = sphi 0, %s99
      %s100 = sphi 0, %s97
      %s101 = sphi 0, %s100
      %s117 = sphi 0, %s101
      %s123 = sphi 0, %s125
      %s126 = sphi 0, %s123
      %s127 = sphi 0, %s126
      %s143 = sphi 0, %s127
    $region4: #{tpu_custom_call.1} parent=1 // loop_header_branch
      %17 = sbr.rel (%p15) target = $region8
    $region5: #{tpu_custom_call.1} parent=1 // loop_body
      %s19 = ssub.s32 %s14, 1
      %s20 = ssub.s32 %s14, 2
      %s21 = sadd.s32 %s14, 1
      %s22 = ssub.s32 %s14, %s21
      %p23 = scmp.eq.s32.totalorder %s22, 0
      %s25 = sadd.s32 %s24, 1
      %s26 = scalar_select %p23, %s24, %s25
      %p29 = pneg %p23
      %p30 = scmp.eq.s32.totalorder %s14, 1
      %p31 = por %p29, %p30
      %p32 = scmp.ne.s32.totalorder %s24, %s27
      %p33 = scmp.eq.s32.totalorder %s14, 0
      %p34 = por %p32, %p33
      %p35 = scmp.ne.s32.totalorder %s24, %s27
      %p36 = scmp.eq.s32.totalorder %s19, 1
      %p37 = por %p35, %p36
      %p38 = scmp.ne.s32.totalorder %s27, %s28
      %p39 = scmp.eq.s32.totalorder %s19, 0
      %p40 = por %p38, %p39
      %p41 = scmp.ne.s32.totalorder %s27, %s28
      %p42 = scmp.eq.s32.totalorder %s20, 1
      %p43 = por %p41, %p42
      %p45 = scmp.ne.s32.totalorder %s28, %s44
      %p46 = scmp.eq.s32.totalorder %s20, 0
      %p47 = por %p45, %p46
      %s49 = sadd.s32 %s48, 1
      %p52 = scmp.eq.s32.totalorder %s14, 1
      %p53 = scmp.ne.s32.totalorder %s48, %s50
      %p54 = scmp.eq.s32.totalorder %s14, 0
      %p55 = por %p53, %p54
      %p56 = scmp.ne.s32.totalorder %s48, %s50
      %p57 = scmp.eq.s32.totalorder %s19, 1
      %p58 = por %p56, %p57
      %p59 = scmp.ne.s32.totalorder %s50, %s51
      %p60 = scmp.eq.s32.totalorder %s19, 0
      %p61 = por %p59, %p60
      %p62 = scmp.ne.s32.totalorder %s50, %s51
      %p63 = scmp.eq.s32.totalorder %s20, 1
      %p64 = por %p62, %p63
      %p66 = scmp.ne.s32.totalorder %s51, %s65
      %p67 = scmp.eq.s32.totalorder %s20, 0
      %p68 = por %p66, %p67
      %s69 = ssub.s32 %s14, %s21
      %p70 = scmp.eq.s32.totalorder %s69, 0
      %s72 = sadd.s32 %s71, 1
      %s73 = scalar_select %p70, %s71, %s72
      %p76 = pneg %p70
      %p77 = scmp.eq.s32.totalorder %s14, 1
      %p78 = por %p76, %p77
      %p79 = scmp.ne.s32.totalorder %s71, %s74
      %p80 = scmp.eq.s32.totalorder %s14, 0
      %p81 = por %p79, %p80
      %p82 = scmp.ne.s32.totalorder %s71, %s74
      %p83 = scmp.eq.s32.totalorder %s19, 1
      %p84 = por %p82, %p83
      %p85 = scmp.ne.s32.totalorder %s74, %s75
      %p86 = scmp.eq.s32.totalorder %s19, 0
      %p87 = por %p85, %p86
      %p88 = scmp.ne.s32.totalorder %s74, %s75
      %p89 = scmp.eq.s32.totalorder %s20, 1
      %p90 = por %p88, %p89
      %p92 = scmp.ne.s32.totalorder %s75, %s91
      %p93 = scmp.eq.s32.totalorder %s20, 0
      %p94 = por %p92, %p93
      %s95 = ssub.s32 %s14, %s21
      %p96 = scmp.eq.s32.totalorder %s95, 0
      %s98 = sadd.s32 %s97, 1
      %s99 = scalar_select %p96, %s97, %s98
      %p102 = pneg %p96
      %p103 = scmp.eq.s32.totalorder %s14, 1
      %p104 = por %p102, %p103
      %p105 = scmp.ne.s32.totalorder %s97, %s100
      %p106 = scmp.eq.s32.totalorder %s14, 0
      %p107 = por %p105, %p106
      %p108 = scmp.ne.s32.totalorder %s97, %s100
      %p109 = scmp.eq.s32.totalorder %s19, 1
      %p110 = por %p108, %p109
      %p111 = scmp.ne.s32.totalorder %s100, %s101
      %p112 = scmp.eq.s32.totalorder %s19, 0
      %p113 = por %p111, %p112
      %p114 = scmp.ne.s32.totalorder %s100, %s101
      %p115 = scmp.eq.s32.totalorder %s20, 1
      %p116 = por %p114, %p115
      %p118 = scmp.ne.s32.totalorder %s101, %s117
      %p119 = scmp.eq.s32.totalorder %s20, 0
      %p120 = por %p118, %p119
      %s121 = ssub.s32 %s14, %s21
      %p122 = scmp.eq.s32.totalorder %s121, 0
      %s124 = sadd.s32 %s123, 1
      %s125 = scalar_select %p122, %s123, %s124
      %p128 = pneg %p122
      %p129 = scmp.eq.s32.totalorder %s14, 1
      %p130 = por %p128, %p129
      %p131 = scmp.ne.s32.totalorder %s123, %s126
      %p132 = scmp.eq.s32.totalorder %s14, 0
      %p133 = por %p131, %p132
      %p134 = scmp.ne.s32.totalorder %s123, %s126
      %p135 = scmp.eq.s32.totalorder %s19, 1
      %p136 = por %p134, %p135
      %p137 = scmp.ne.s32.totalorder %s126, %s127
      %p138 = scmp.eq.s32.totalorder %s19, 0
      %p139 = por %p137, %p138
      %p140 = scmp.ne.s32.totalorder %s126, %s127
      %p141 = scmp.eq.s32.totalorder %s20, 1
      %p142 = por %p140, %p141
      %p144 = scmp.ne.s32.totalorder %s127, %s143
      %p145 = scmp.eq.s32.totalorder %s20, 0
      %p146 = por %p144, %p145
      %p147 = scmp.le.s32.totalorder 1, %s14
      %p148 = scmp.lt.s32.totalorder %s14, 3
      %p149 = pnand %p147, %p148
      %p150 = pneg %p149
      // Predicated region
      $region9: #{tpu_custom_call.1} parent=5 // pred_check
        _
      $region10: #{tpu_custom_call.1} parent=5 // pred_check_branch
        %152 = sbr.rel (%p149) target = $region12
      $region11: #{tpu_custom_call.1} parent=5 // pred_region
        %s153 = ssub.s32 %s14, 1
        // Predicated region
        $region13: #{tpu_custom_call.1} parent=11 // pred_check
          %p154 = pneg %p61
        $region14: #{tpu_custom_call.1} parent=11 // pred_check_branch
          %156 = sbr.rel (%p154) target = $region16
        $region15: #{tpu_custom_call.1} parent=11 // pred_region
          _
        $region16: #{tpu_custom_call.1} parent=11 // pred_fallthru
          _
      $region12: #{tpu_custom_call.1} parent=5 // pred_fallthru
        _
      %p157 = scmp.lt.s32.totalorder %s14, 2
      // Predicated region
      $region17: #{tpu_custom_call.1} parent=5 // pred_check
        %p158 = pneg %p157
      $region18: #{tpu_custom_call.1} parent=5 // pred_check_branch
        %160 = sbr.rel (%p158) target = $region20
      $region19: #{tpu_custom_call.1} parent=5 // pred_region
        // Predicated region
        $region21: #{tpu_custom_call.1} parent=19 // pred_check
          %p161 = pneg %p34
        $region22: #{tpu_custom_call.1} parent=19 // pred_check_branch
          %163 = sbr.rel (%p161) target = $region24
        $region23: #{tpu_custom_call.1} parent=19 // pred_region
          %p164 = scmp.lt.s32.totalorder %s14, 1
          %s165 = scalar_select %p164, %s14, 1
          %s166 = smul.addr %s165, 4
          %s167 = scalar_lea.vmem %s0, %s166
        $region24: #{tpu_custom_call.1} parent=19 // pred_fallthru
          _
      $region20: #{tpu_custom_call.1} parent=5 // pred_fallthru
        _
      %p168 = scmp.le.s32.totalorder 1, %s14
      %p169 = scmp.lt.s32.totalorder %s14, 3
      %p170 = pnand %p168, %p169
      %p171 = pneg %p170
      // Predicated region
      $region25: #{tpu_custom_call.1} parent=5 // pred_check
        _
      $region26: #{tpu_custom_call.1} parent=5 // pred_check_branch
        %173 = sbr.rel (%p170) target = $region28
      $region27: #{tpu_custom_call.1} parent=5 // pred_region
        %s174 = ssub.s32 %s14, 1
        %p175 = scmp.lt.s32.totalorder %s19, 1
        %s176 = scalar_select %p175, %s19, 1
        %s177 = smul.addr %s176, 4
        %s178 = scalar_lea.vmem %s0, %s177
        %p179 = pneg %p40
        %p180 = pneg %p37
        %p181 = pneg %p61
        %p182 = pneg %p58
        %p183 = pneg %p87
        %p184 = pneg %p84
        %s185 = sand.u32 %s74, 1
        %s186 = scalar_lea.sflag [#allocation3], %s185
        %s187 = sand.u32 %s74, 1
        %s188 = smul.addr %s187, 2
        %s189 = scalar_lea.vmem [#allocation2], %s188
        %p190 = pneg %p113
        %p191 = pneg %p110
        %p192 = scmp.lt.s32.totalorder %s19, 1
        %s193 = scalar_select %p192, %s19, 1
        %s194 = smul.addr %s193, 4
        %s195 = scalar_lea.vmem %s3, %s194
        %p196 = pneg %p139
        %p197 = pneg %p136
        %p198 = scmp.lt.s32.totalorder %s19, 1
        %s199 = scalar_select %p198, %s19, 1
        %s200 = smul.addr %s199, 4
        %s201 = scalar_lea.vmem %s4, %s200
        %p202 = scmp.lt.s32.totalorder %s19, 1
        %s203 = scalar_select %p202, %s19, 1
        %s204 = smul.addr %s203, 4
        %s205 = scalar_lea.vmem %s0, %s204
        %p206 = scmp.lt.s32.totalorder %s19, 1
        %s207 = scalar_select %p206, %s19, 1
        %s208 = smul.addr %s207, 4
        %s209 = scalar_lea.vmem %s3, %s208
        %p210 = scmp.lt.s32.totalorder %s19, 1
        %s211 = scalar_select %p210, %s19, 1
        %s212 = smul.addr %s211, 4
        %s213 = scalar_lea.vmem %s4, %s212
        %v215 = vld [vmem:[%s205] sm:$0xf]
        %vm216 = vcmask 125952
        %v217 = vsel %vm216, %v215, 0.0
        %218 = vadd.xlane.f32.xlu0 %v217
        %v219 = vpop.xlane.xlu0 %218
        %v220 = vmul.f32 %v215, %v215
        %v221 = vsel %vm216, %v220, 0.0
        %222 = vadd.xlane.f32.xlu0 %v221
        %v223 = vpop.xlane.xlu0 %222
        %v224 = vmul.f32 %v219, 0.0625
        %v225 = vmul.f32 %v223, 0.0625
        %v226 = vmul.f32 %v224, %v224
        %v227 = vsub.f32 %v225, %v226
        %v228 = vadd.f32 %v227, 1e-05
        %v229 = vrsqrt.pop %v228
        %v230 = vmul.f32 %v228, %v229
        %vm231 = vcmp.eq.f32.partialorder %v228, inf
        %v232 = vsel %vm231, %v228, %v230
        %vm233 = vcmp.eq.f32.partialorder %v228, 0.0
        %v234 = vand.u32 %v228, 2147483648
        %v235 = vsel %vm233, %v234, %v232
        %v236 = vsub.f32 %v215, %v224
        %v237 = vrcp.pop %v235
        %v238 = vmul.f32 %v236, %v237
        %v239 = vpack.c.bf16 %v238, %v238
        %v240 = vld [vmem:[%s1] sm:$0xf]
        %v241 = vld [vmem:[%s1 + $0x4] sm:$0xf]
        %v244 = vunpack.c.l.b16 %v240
        %v245 = vunpack.c.l.b16 %v241
        %v246 = vpack.c.b16 %v245, %v244
        %vm248 = vcmask 130048
        %v250 = vsel %vm248, %v239, 0
        %252 = vmatprep.subr.bf16.mxu0 0
        %253 = vmatpush1.bf16.msra.mxu0 0
        %254 = vmatprep.subr.bf16.mxu0 0
        %255 = vmatpush1.bf16.msra.mxu0 0
        %256 = vmatprep.subr.bf16.mxu0 0
        %257 = vmatpush1.bf16.msra.mxu0 0
        %258 = vmatprep.subr.bf16.mxu0 0
        %259 = vmatpush1.bf16.msra.mxu0 0
        %260 = vmatprep.subr.bf16.mxu0 0
        %261 = vmatpush1.bf16.msra.mxu0 0
        %262 = vmatprep.subr.bf16.mxu0 0
        %263 = vmatpush1.bf16.msra.mxu0 0
        %264 = vmatprep.subr.bf16.mxu0 0
        %265 = vmatpush1.bf16.msra.mxu0 0
        %266 = vmatprep.subr.bf16.mxu0 0
        %267 = vmatpush1.bf16.msra.mxu0 %v246
        %268 = vmatprep.subr.bf16.mxu0 0
        %269 = vmatpush2.bf16.msra.mxu0 0
        %270 = vmatprep.subr.bf16.mxu0 0
        %271 = vmatpush2.bf16.msra.mxu0 0
        %272 = vmatprep.subr.bf16.mxu0 0
        %273 = vmatpush2.bf16.msra.mxu0 0
        %274 = vmatprep.subr.bf16.mxu0 0
        %275 = vmatpush2.bf16.msra.mxu0 0
        %276 = vmatprep.subr.bf16.mxu0 0
        %277 = vmatpush2.bf16.msra.mxu0 0
        %278 = vmatprep.subr.bf16.mxu0 0
        %279 = vmatpush2.bf16.msra.mxu0 0
        %280 = vmatprep.subr.bf16.mxu0 0
        %281 = vmatpush2.bf16.msra.mxu0 0
        %282 = vmatprep.subr.bf16.mxu0 0
        %283 = vmatpush2.bf16.msra.mxu0 0
        %284 = vmatprep.mubr.bf16.mxu0 0
        %285 = vmatmul.mubr.bf16.gmra.mxu0 %v250
        %v286 = vpop.f32.mrf.mxu0
        %v287 = vadd.f32 0.0, %v286
        %v288 = vpop.f32.mrf.mxu0
        %v289 = vpop.f32.mrf.mxu0
        %v290 = vpop.f32.mrf.mxu0
        %291 = vdwg.mxu0
        %vm292 = vcmask 123904
        %293 = vst.msk [vmem:[%s189] sm:$0x3] %vm292, %v239
        %v294 = vpack.c.bf16 %v287, %v287
        %v297 = vunpack.c.l.s4 1983009808
        %v298 = vunpack.c.0.s8 %v297
        %v299 = vlaneseq
        %v300 = vshrl.u32 %v299, 7
        %v301 = vsub.s32 %v298, %v300
        %v302 = vrot.slane %v294, %v301
        %303 = vrot.lane.b32.xlu0 %v302, 16
        %v304 = vpop.permute.xlu0 %303
        %vm306 = vcmask 189568
        %307 = vst.msk [vmem:[%s189] sm:$0x3] %vm306, %v304
        %vm308 = vcmask 3072
        %309 = vst.msk [vmem:[%s209] sm:$0xf] %vm308, %v224
        %310 = vst.msk [vmem:[%s213] sm:$0xf] %vm308, %v235
        %s311 = sand.u32 %s74, 1
        %s312 = scalar_lea.sflag [#allocation3], %s311
        %s313 = sand.u32 %s74, 1
        %s314 = smul.addr %s313, 2
        %s315 = scalar_lea.vmem [#allocation2], %s314
        %p316 = scmp.lt.s32.totalorder %s19, 1
        %s317 = scalar_select %p316, %s19, 1
        %s318 = smul.addr %s317, 4
        %s319 = scalar_lea.vmem %s3, %s318
        %p320 = scmp.lt.s32.totalorder %s19, 1
        %s321 = scalar_select %p320, %s19, 1
        %s322 = smul.addr %s321, 4
        %s323 = scalar_lea.vmem %s4, %s322
        // Predicated region
        $region29: #{tpu_custom_call.1} parent=27 // pred_check
          %p324 = pneg %p84
        $region30: #{tpu_custom_call.1} parent=27 // pred_check_branch
          %326 = sbr.rel (%p324) target = $region32
        $region31: #{tpu_custom_call.1} parent=27 // pred_region
          %s328 = ssub.s32 32, 32
          %329 = vsyncadd %s312, %s328
          %s330 = smul.addr %s19, 32
          %s331 = scalar_lea.hbm %s2, %s330
          %s333 = sshll.u32 %s315, 4
          %s334 = int_to_ptr.vmem [resolvable:$true] %s333
          %336 = dma.vmem_to_hbm [thread:$0]  %s334, 32, %s331, %s312
        $region32: #{tpu_custom_call.1} parent=27 // pred_fallthru
          _
        // Predicated region
        $region33: #{tpu_custom_call.1} parent=27 // pred_check
          %p337 = pneg %p110
        $region34: #{tpu_custom_call.1} parent=27 // pred_check_branch
          %339 = sbr.rel (%p337) target = $region36
        $region35: #{tpu_custom_call.1} parent=27 // pred_region
          _
        $region36: #{tpu_custom_call.1} parent=27 // pred_fallthru
          _
        // Predicated region
        $region37: #{tpu_custom_call.1} parent=27 // pred_check
          %p340 = pneg %p136
        $region38: #{tpu_custom_call.1} parent=27 // pred_check_branch
          %342 = sbr.rel (%p340) target = $region40
        $region39: #{tpu_custom_call.1} parent=27 // pred_region
          _
        $region40: #{tpu_custom_call.1} parent=27 // pred_fallthru
          _
      $region28: #{tpu_custom_call.1} parent=5 // pred_fallthru
        _
      %p343 = scmp.le.s32.totalorder 2, %s14
      // Predicated region
      $region41: #{tpu_custom_call.1} parent=5 // pred_check
        %p344 = pneg %p343
      $region42: #{tpu_custom_call.1} parent=5 // pred_check_branch
        %346 = sbr.rel (%p344) target = $region44
      $region43: #{tpu_custom_call.1} parent=5 // pred_region
        %s347 = ssub.s32 %s14, 2
        // Predicated region
        $region45: #{tpu_custom_call.1} parent=43 // pred_check
          %p348 = pneg %p90
        $region46: #{tpu_custom_call.1} parent=43 // pred_check_branch
          %350 = sbr.rel (%p348) target = $region48
        $region47: #{tpu_custom_call.1} parent=43 // pred_region
          %s351 = sand.u32 %s75, 1
          %s352 = scalar_lea.sflag [#allocation3], %s351
          %s353 = sand.u32 %s75, 1
          %s354 = smul.addr %s353, 2
          %s355 = scalar_lea.vmem [#allocation2], %s354
          %356 = dma.done %s352, 32
        $region48: #{tpu_custom_call.1} parent=43 // pred_fallthru
          _
        // Predicated region
        $region49: #{tpu_custom_call.1} parent=43 // pred_check
          %p357 = pneg %p116
        $region50: #{tpu_custom_call.1} parent=43 // pred_check_branch
          %359 = sbr.rel (%p357) target = $region52
        $region51: #{tpu_custom_call.1} parent=43 // pred_region
          %p360 = scmp.lt.s32.totalorder %s20, 1
          %s361 = scalar_select %p360, %s20, 1
          %s362 = smul.addr %s361, 4
          %s363 = scalar_lea.vmem %s3, %s362
        $region52: #{tpu_custom_call.1} parent=43 // pred_fallthru
          _
        // Predicated region
        $region53: #{tpu_custom_call.1} parent=43 // pred_check
          %p364 = pneg %p142
        $region54: #{tpu_custom_call.1} parent=43 // pred_check_branch
          %366 = sbr.rel (%p364) target = $region56
        $region55: #{tpu_custom_call.1} parent=43 // pred_region
          %p367 = scmp.lt.s32.totalorder %s20, 1
          %s368 = scalar_select %p367, %s20, 1
          %s369 = smul.addr %s368, 4
          %s370 = scalar_lea.vmem %s4, %s369
        $region56: #{tpu_custom_call.1} parent=43 // pred_fallthru
          _
      $region44: #{tpu_custom_call.1} parent=5 // pred_fallthru
        _
    $region6: #{tpu_custom_call.1} parent=1 // loop_footer
      %s18 = sadd.s32 1, %s14
    $region7: #{tpu_custom_call.1} parent=1 // loop_footer_branch
      %13 = sbr.rel target = $region3
    $region8: #{tpu_custom_call.1} parent=1 // loop_exit
      _
    %371 = vsyncpa [#allocation3], 1
    %s372 = scalar_lea.sflag [#allocation3], 1
    %373 = vsyncpa %s372, 1

</llo_original>
